<compile_context>
chip_gen: v7x
topology: tpu7x:2x2x1
jax: 0.10.0
libtpu: 0.0.40
codegen_flags: <defaults>
</compile_context>

<pallas_src>
import functools

import jax
import jax.numpy as jnp
from jax.experimental import pallas as pl
from jax.experimental.pallas import tpu as pltpu


def _vector_dist_kernel(e1_ref, e2_ref, out_ref):
    # e1_ref, e2_ref: (block_rows, dim) f32 tiles in VMEM
    # out_ref:        (1, block_rows)   f32 lane-dense output tile
    d = e1_ref[...] - e2_ref[...]
    sq = jnp.sum(d * d, axis=-1)          # (block_rows,) per-row squared dist
    # One XLU relayout (column -> lane row) buys unmasked, dense stores.
    out_ref[...] = -sq[None, :]


def _round_up(x, m):
    return ((x + m - 1) // m) * m


def _choose_block_rows(n, dim, requested):
    # VMEM budget for the two f32 input tiles, double-buffered by the pipeline:
    #   2 inputs * 2 buffers * block_rows * dim * 4B  <= ~16 MiB
    # (safe against default scoped-VMEM limits on v5e/v6e/v7x).
    budget_bytes = 16 * 1024 * 1024
    cap = max(128, (budget_bytes // (16 * dim)) // 128 * 128)
    br = max(128, (min(requested, cap) // 128) * 128)
    if n <= br:
        # Small problem: shrink the block so the grid can still have >= 2 steps
        # (lets v7x's two TensorCores both get work); floor of 128 keeps the
        # output lane axis dense and the sublane axis (8,128)-aligned.
        br = max(128, _round_up(-(-n // 2), 128))
    return br


@functools.partial(jax.jit, static_argnames=("block_rows",))
def vector_dist(emb_in, emb_out, idxs, *, block_rows=2048):
    """Pallas implementation of VectorDist.forward.

    emb_in, emb_out : (num_entity, dim) float32 embedding tables
    idxs            : (..., 2) integer index pairs
    returns         : (...,) float32 log_probs = -sum((e_in - e_out)^2, -1)
    """
    lead_shape = idxs.shape[:-1]
    flat = idxs.reshape(-1, 2).astype(jnp.int32)
    n = flat.shape[0]
    dim = emb_in.shape[1]

    br = _choose_block_rows(n, dim, block_rows)
    n_pad = _round_up(n, br)
    if n_pad != n:
        # Pad the (tiny) index array, not the gathered f32 slabs: avoids two
        # extra full-slab HBM copies. Padded rows are garbage and sliced off.
        flat = jnp.pad(flat, ((0, n_pad - n), (0, 0)))

    # TODO(synk): fuse the embedding gather into the kernel (scalar-prefetched
    # indices + in-kernel / DMA row gather from an ANY-space table) to remove
    # one more full HBM pass; kept as an XLA gather for lowering robustness.
    e1 = jnp.take(emb_in, flat[:, 0], axis=0).astype(jnp.float32)
    e2 = jnp.take(emb_out, flat[:, 1], axis=0).astype(jnp.float32)

    num_blocks = n_pad // br
    out = pl.pallas_call(
        _vector_dist_kernel,
        out_shape=jax.ShapeDtypeStruct((1, n_pad), jnp.float32),
        grid=(num_blocks,),
        in_specs=[
            pl.BlockSpec((br, dim), lambda i: (i, 0)),
            pl.BlockSpec((br, dim), lambda i: (i, 0)),
        ],
        out_specs=pl.BlockSpec((1, br), lambda i: (0, i)),
        compiler_params=pltpu.CompilerParams(
            dimension_semantics=("parallel",),
            vmem_limit_bytes=32 * 1024 * 1024,
        ),
    )(e1, e2)

    return out[0, :n].reshape(lead_shape)


if __name__ == "__main__":
    num_entity = 50
    dim = 32
    separate_io = True

    key = jax.random.PRNGKey(0)
    k_in, k_out, k_idx = jax.random.split(key, 3)

    # torch.nn.Embedding default init ~ N(0, 1)
    embeddings_in = jax.random.normal(k_in, (num_entity, dim), dtype=jnp.float32)
    if separate_io:
        embeddings_out = jax.random.normal(k_out, (num_entity, dim), dtype=jnp.float32)
    else:
        embeddings_out = embeddings_in

    # idxs: (batch=2, negatives+1=8, 2) integer pairs
    idxs = jax.random.randint(k_idx, (2, 8, 2), 0, num_entity, dtype=jnp.int32)

    log_probs = vector_dist(embeddings_in, embeddings_out, idxs)
    log_probs = jax.block_until_ready(log_probs)

    # Reference (plain JAX) check of the PyTorch semantics.
    r1 = jnp.take(embeddings_in, idxs[..., 0], axis=0)
    r2 = jnp.take(embeddings_out, idxs[..., 1], axis=0)
    ref = -jnp.sum(jnp.square(r1 - r2), axis=-1)

    assert log_probs.shape == idxs.shape[:-1]
    assert log_probs.dtype == jnp.float32
    assert jnp.allclose(log_probs, ref, atol=1e-5, rtol=1e-5)

    print("KERNEL_OK")
</pallas_src>

<mosaic_0001>
module attributes {stable_mosaic.version = 11 : i64} {
  func.func @_vector_dist_kernel(%arg0: i32, %arg1: memref<128x32xf32, #tpu.memory_space<vmem>>, %arg2: memref<128x32xf32, #tpu.memory_space<vmem>>, %arg3: memref<1x128xf32, #tpu.memory_space<vmem>>) attributes {dimension_semantics = [#tpu.dimension_semantics<parallel>], iteration_bounds = array<i64: 1>, scalar_prefetch = 0 : i64, scratch_operands = 0 : i64, tpu.core_type = #tpu.core_type<tc>, window_params = [{transform_indices = @transform_0, window_bounds = array<i64: 128, 32>}, {transform_indices = @transform_1, window_bounds = array<i64: 128, 32>}, {transform_indices = @transform_2, window_bounds = array<i64: 1, 128>}]} {
    %c0 = arith.constant 0 : index
    %c0_0 = arith.constant 0 : index
    %0 = vector.load %arg1[%c0, %c0_0] : memref<128x32xf32, #tpu.memory_space<vmem>>, vector<128x32xf32>
    %c0_1 = arith.constant 0 : index
    %c0_2 = arith.constant 0 : index
    %1 = vector.load %arg2[%c0_1, %c0_2] : memref<128x32xf32, #tpu.memory_space<vmem>>, vector<128x32xf32>
    %2 = arith.subf %0, %1 : vector<128x32xf32>
    %3 = arith.mulf %2, %2 : vector<128x32xf32>
    %cst = arith.constant dense<0.000000e+00> : vector<128xf32>
    %4 = vector.multi_reduction <add>, %3, %cst [1] : vector<128x32xf32> to vector<128xf32>
    %5 = vector.shape_cast %4 : vector<128xf32> to vector<1x128xf32>
    %cst_3 = arith.constant 0.000000e+00 : f32
    %6 = vector.broadcast %cst_3 : f32 to vector<1x128xf32>
    %7 = arith.subf %6, %5 : vector<1x128xf32>
    %c0_4 = arith.constant 0 : index
    %c0_5 = arith.constant 0 : index
    %8 = vector.load %arg3[%c0_4, %c0_5] : memref<1x128xf32, #tpu.memory_space<vmem>>, vector<1x128xf32>
    tpu.vector_store %arg3[%c0_4, %c0_5], %7 {strides = array<i32>} : memref<1x128xf32, #tpu.memory_space<vmem>>, vector<1x128xf32>,
    return
  }
  func.func @transform_0(%arg0: i32) -> (i32, i32) {
    %c0_i32 = arith.constant 0 : i32
    %c0_i32_0 = arith.constant 0 : i32
    return %arg0, %c0_i32 : i32, i32
  }
  func.func @transform_1(%arg0: i32) -> (i32, i32) {
    %c0_i32 = arith.constant 0 : i32
    %c0_i32_0 = arith.constant 0 : i32
    return %arg0, %c0_i32 : i32, i32
  }
  func.func @transform_2(%arg0: i32) -> (i32, i32) {
    %c0_i32 = arith.constant 0 : i32
    %c0_i32_0 = arith.constant 0 : i32
    return %c0_i32, %arg0 : i32, i32
  }
}

</mosaic_0001>

<llo_original>
// kernel: squeeze.5
$region0: #{squeeze.5}
  %s0 = inlined_call_operand.vmem [shape: f32[16], index: 0, kind: input, shape index: {}]
  %s1 = inlined_call_operand.hbm [shape: f32[2,8], index: 1, kind: output, shape index: {}]
  $region1: #{squeeze.5} parent=0
    #allocation0 [shape = 'u8[1024]{0}', space=vmem, size = 0x400, scoped, tag = 'operand span for operand 1']
    #allocation1 [shape = 's32[1]{0}', space=sflag, size = 0x4, scoped, tag = 'scoped memory for squeeze.5']
    #allocation2 [shape = 'u8[4096]{0}', space=vmem, size = 0x1000, scoped, tag = 'scoped mem for output reshape']
    #allocation3 [shape = 'u8[4096]{0}', space=vmem, size = 0x1000, scoped, tag = 'scoped mem for input reshape']
    %2 = vsyncpa [#allocation1], 0
    %s4 = sshllo.u32 0, 1
    %v5 = vld [vmem:[%s0] sm:%s4]
    %6 = vst [vmem:[#allocation3] sm:%s4] %v5
    %v7 = vld [vmem:[#allocation3] sm:$0x1]
    %vm8 = vcmask 64512
    %9 = vst.msk [vmem:[#allocation2] sm:$0x1] %vm8, %v7
    %v10 = vld [vmem:[#allocation3] sm:$0x1]
    %11 = vrot.lane.b32.xlu0 %v10, 120
    %v12 = vpop.permute.xlu0 %11
    %vm13 = vcmask 64512
    %s14 = scalar_lea.vmem [#allocation2], 1
    %15 = vst.msk [vmem:[%s14] sm:$0x1] %vm13, %v12
    %s17 = sshllo.u32 0, 2
    %v19 = vld [vmem:[#allocation2] sm:%s17]
    %s20 = sshllo.u32 0, 2
    %21 = vst [vmem:[#allocation0] sm:%s20] %v19
    %s23 = ssub.s32 32, 32
    %24 = vsyncadd [#allocation1], %s23
    %s26 = sshll.u32 [#allocation0], 4
    %s27 = int_to_ptr.vmem [resolvable:$true] %s26
    %29 = dma.vmem_to_hbm [thread:$0]  %s27, 32, %s1, [#allocation1]
    %30 = dma.done [#allocation1], 32
    %31 = vsyncpa [#allocation1], 1

// kernel: vector_dist.1
$region0: #{vector_dist.1}
  #allocation0 [shape = 'u32[]', space=smem, size = 0x4, offset = 0x4, fixed_abs, tag = 'smem constant byte address 0x4 - core index']
  #allocation1 [shape = 'u32[144,128]{1,0:T(1,128)}', space=vmem, size = 0x12000, scoped, tag = 'internal scratch']
  %s0 = inlined_call_operand.vmem [shape: f32[128,32], index: 0, kind: input, shape index: {}]
  %s1 = inlined_call_operand.vmem [shape: f32[128,32], index: 1, kind: input, shape index: {}]
  %s2 = inlined_call_operand.vmem [shape: f32[1,128], index: 2, kind: output, shape index: {}]
  %s3 = sld [smem:[#allocation0]]
  $region18: #{vector_dist.1} parent=0
    _
  %s5 = ssub.s32 1, %s3
  %s6 = scalar_select 0, %s5, %s3
  // Predicated region
  $region2: #{vector_dist.1} parent=0 // pred_check
    _
  $region3: #{vector_dist.1} parent=0 // pred_check_branch
    %8 = sbr.rel (0) target = $region5
  $region4: #{vector_dist.1} parent=0 // pred_region
    _
  $region5: #{vector_dist.1} parent=0 // pred_fallthru
    _
  // Predicated region
  $region6: #{vector_dist.1} parent=0 // pred_check
    _
  $region7: #{vector_dist.1} parent=0 // pred_check_branch
    %10 = sbr.rel (0) target = $region9
  $region8: #{vector_dist.1} parent=0 // pred_region
    _
  $region9: #{vector_dist.1} parent=0 // pred_fallthru
    _
  %v11 = vld [vmem:[%s0] sm:$0xff]
  %v12 = vld [vmem:[%s0 + $0x8] sm:$0xff]
  %v13 = vld [vmem:[%s0 + $0x10] sm:$0xff]
  %v14 = vld [vmem:[%s0 + $0x18] sm:$0xff]
  %v15 = vld [vmem:[%s0 + $0x20] sm:$0xff]
  %v16 = vld [vmem:[%s0 + $0x28] sm:$0xff]
  %v17 = vld [vmem:[%s0 + $0x30] sm:$0xff]
  %v18 = vld [vmem:[%s0 + $0x38] sm:$0xff]
  %v19 = vld [vmem:[%s0 + $0x40] sm:$0xff]
  %v20 = vld [vmem:[%s0 + $0x48] sm:$0xff]
  %v21 = vld [vmem:[%s0 + $0x50] sm:$0xff]
  %v22 = vld [vmem:[%s0 + $0x58] sm:$0xff]
  %v23 = vld [vmem:[%s0 + $0x60] sm:$0xff]
  %v24 = vld [vmem:[%s0 + $0x68] sm:$0xff]
  %v25 = vld [vmem:[%s0 + $0x70] sm:$0xff]
  %v26 = vld [vmem:[%s0 + $0x78] sm:$0xff]
  %v27 = vld [vmem:[%s1] sm:$0xff]
  %v28 = vld [vmem:[%s1 + $0x8] sm:$0xff]
  %v29 = vld [vmem:[%s1 + $0x10] sm:$0xff]
  %v30 = vld [vmem:[%s1 + $0x18] sm:$0xff]
  %v31 = vld [vmem:[%s1 + $0x20] sm:$0xff]
  %v32 = vld [vmem:[%s1 + $0x28] sm:$0xff]
  %v33 = vld [vmem:[%s1 + $0x30] sm:$0xff]
  %v34 = vld [vmem:[%s1 + $0x38] sm:$0xff]
  %v35 = vld [vmem:[%s1 + $0x40] sm:$0xff]
  %v36 = vld [vmem:[%s1 + $0x48] sm:$0xff]
  %v37 = vld [vmem:[%s1 + $0x50] sm:$0xff]
  %v38 = vld [vmem:[%s1 + $0x58] sm:$0xff]
  %v39 = vld [vmem:[%s1 + $0x60] sm:$0xff]
  %v40 = vld [vmem:[%s1 + $0x68] sm:$0xff]
  %v41 = vld [vmem:[%s1 + $0x70] sm:$0xff]
  %v42 = vld [vmem:[%s1 + $0x78] sm:$0xff]
  %v43 = vsub.f32 %v11, %v27
  %v44 = vsub.f32 %v12, %v28
  %v45 = vsub.f32 %v13, %v29
  %v46 = vsub.f32 %v14, %v30
  %v47 = vsub.f32 %v15, %v31
  %v48 = vsub.f32 %v16, %v32
  %v49 = vsub.f32 %v17, %v33
  %v50 = vsub.f32 %v18, %v34
  %v51 = vsub.f32 %v19, %v35
  %v52 = vsub.f32 %v20, %v36
  %v53 = vsub.f32 %v21, %v37
  %v54 = vsub.f32 %v22, %v38
  %v55 = vsub.f32 %v23, %v39
  %v56 = vsub.f32 %v24, %v40
  %v57 = vsub.f32 %v25, %v41
  %v58 = vsub.f32 %v26, %v42
  %v59 = vmul.f32 %v43, %v43
  %v60 = vmul.f32 %v44, %v44
  %v61 = vmul.f32 %v45, %v45
  %v62 = vmul.f32 %v46, %v46
  %v63 = vmul.f32 %v47, %v47
  %v64 = vmul.f32 %v48, %v48
  %v65 = vmul.f32 %v49, %v49
  %v66 = vmul.f32 %v50, %v50
  %v67 = vmul.f32 %v51, %v51
  %v68 = vmul.f32 %v52, %v52
  %v69 = vmul.f32 %v53, %v53
  %v70 = vmul.f32 %v54, %v54
  %v71 = vmul.f32 %v55, %v55
  %v72 = vmul.f32 %v56, %v56
  %v73 = vmul.f32 %v57, %v57
  %v74 = vmul.f32 %v58, %v58
  %vm75 = vcmask 261120
  %v76 = vsel %vm75, %v59, 0.0
  %77 = vadd.xlane.f32.xlu0 %v76
  %v78 = vpop.xlane.xlu0 %77
  %v79 = vsel %vm75, %v60, 0.0
  %80 = vadd.xlane.f32.xlu0 %v79
  %v81 = vpop.xlane.xlu0 %80
  %v82 = vsel %vm75, %v61, 0.0
  %83 = vadd.xlane.f32.xlu0 %v82
  %v84 = vpop.xlane.xlu0 %83
  %v85 = vsel %vm75, %v62, 0.0
  %86 = vadd.xlane.f32.xlu0 %v85
  %v87 = vpop.xlane.xlu0 %86
  %v88 = vsel %vm75, %v63, 0.0
  %89 = vadd.xlane.f32.xlu0 %v88
  %v90 = vpop.xlane.xlu0 %89
  %v91 = vsel %vm75, %v64, 0.0
  %92 = vadd.xlane.f32.xlu0 %v91
  %v93 = vpop.xlane.xlu0 %92
  %v94 = vsel %vm75, %v65, 0.0
  %95 = vadd.xlane.f32.xlu0 %v94
  %v96 = vpop.xlane.xlu0 %95
  %v97 = vsel %vm75, %v66, 0.0
  %98 = vadd.xlane.f32.xlu0 %v97
  %v99 = vpop.xlane.xlu0 %98
  %v100 = vsel %vm75, %v67, 0.0
  %101 = vadd.xlane.f32.xlu0 %v100
  %v102 = vpop.xlane.xlu0 %101
  %v103 = vsel %vm75, %v68, 0.0
  %104 = vadd.xlane.f32.xlu0 %v103
  %v105 = vpop.xlane.xlu0 %104
  %v106 = vsel %vm75, %v69, 0.0
  %107 = vadd.xlane.f32.xlu0 %v106
  %v108 = vpop.xlane.xlu0 %107
  %v109 = vsel %vm75, %v70, 0.0
  %110 = vadd.xlane.f32.xlu0 %v109
  %v111 = vpop.xlane.xlu0 %110
  %v112 = vsel %vm75, %v71, 0.0
  %113 = vadd.xlane.f32.xlu0 %v112
  %v114 = vpop.xlane.xlu0 %113
  %v115 = vsel %vm75, %v72, 0.0
  %116 = vadd.xlane.f32.xlu0 %v115
  %v117 = vpop.xlane.xlu0 %116
  %v118 = vsel %vm75, %v73, 0.0
  %119 = vadd.xlane.f32.xlu0 %v118
  %v120 = vpop.xlane.xlu0 %119
  %v121 = vsel %vm75, %v74, 0.0
  %122 = vadd.xlane.f32.xlu0 %v121
  %v123 = vpop.xlane.xlu0 %122
  %v124 = vsub.f32 0.0, %v78
  %v125 = vsub.f32 0.0, %v81
  %v126 = vsub.f32 0.0, %v84
  %v127 = vsub.f32 0.0, %v87
  %v128 = vsub.f32 0.0, %v90
  %v129 = vsub.f32 0.0, %v93
  %v130 = vsub.f32 0.0, %v96
  %v131 = vsub.f32 0.0, %v99
  %v132 = vsub.f32 0.0, %v102
  %v133 = vsub.f32 0.0, %v105
  %v134 = vsub.f32 0.0, %v108
  %v135 = vsub.f32 0.0, %v111
  %v136 = vsub.f32 0.0, %v114
  %v137 = vsub.f32 0.0, %v117
  %v138 = vsub.f32 0.0, %v120
  %v139 = vsub.f32 0.0, %v123
  %v156 = vlaneseq
  %v157 = vand.u32 %v156, 127
  %v158 = vlaneseq
  %v159 = vshrl.u32 %v158, 7
  %v160 = vsub.s32 %v157, %v159
  %v161 = vrot.slane %v124, %v160
  %v162 = vadd.s32 %v157, 4294967288
  %v163 = vlaneseq
  %v164 = vshrl.u32 %v163, 7
  %v165 = vsub.s32 %v162, %v164
  %v166 = vrot.slane %v125, %v165
  %vm167 = vcmask 130112
  %v168 = vsel %vm167, %v166, %v161
  %v169 = vadd.s32 %v157, 4294967280
  %v170 = vlaneseq
  %v171 = vshrl.u32 %v170, 7
  %v172 = vsub.s32 %v169, %v171
  %v173 = vrot.slane %v126, %v172
  %vm174 = vcmask 195712
  %v175 = vsel %vm174, %v173, %v168
  %v176 = vadd.s32 %v157, 4294967272
  %v177 = vlaneseq
  %v178 = vshrl.u32 %v177, 7
  %v179 = vsub.s32 %v176, %v178
  %v180 = vrot.slane %v127, %v179
  %vm181 = vcmask 261312
  %v182 = vsel %vm181, %v180, %v175
  %v183 = vadd.s32 %v157, 4294967264
  %v184 = vlaneseq
  %v185 = vshrl.u32 %v184, 7
  %v186 = vsub.s32 %v183, %v185
  %v187 = vrot.slane %v128, %v186
  %vm188 = vcmask 326912
  %v189 = vsel %vm188, %v187, %v182
  %v190 = vadd.s32 %v157, 4294967256
  %v191 = vlaneseq
  %v192 = vshrl.u32 %v191, 7
  %v193 = vsub.s32 %v190, %v192
  %v194 = vrot.slane %v129, %v193
  %vm195 = vcmask 392512
  %v196 = vsel %vm195, %v194, %v189
  %v197 = vadd.s32 %v157, 4294967248
  %v198 = vlaneseq
  %v199 = vshrl.u32 %v198, 7
  %v200 = vsub.s32 %v197, %v199
  %v201 = vrot.slane %v130, %v200
  %vm202 = vcmask 458112
  %v203 = vsel %vm202, %v201, %v196
  %v204 = vadd.s32 %v157, 4294967240
  %v205 = vlaneseq
  %v206 = vshrl.u32 %v205, 7
  %v207 = vsub.s32 %v204, %v206
  %v208 = vrot.slane %v131, %v207
  %vm209 = vcmask 523712
  %v210 = vsel %vm209, %v208, %v203
  %v211 = vadd.s32 %v157, 4294967232
  %v212 = vlaneseq
  %v213 = vshrl.u32 %v212, 7
  %v214 = vsub.s32 %v211, %v213
  %v215 = vrot.slane %v132, %v214
  %vm216 = vcmask 589312
  %v217 = vsel %vm216, %v215, %v210
  %v218 = vadd.s32 %v157, 4294967224
  %v219 = vlaneseq
  %v220 = vshrl.u32 %v219, 7
  %v221 = vsub.s32 %v218, %v220
  %v222 = vrot.slane %v133, %v221
  %vm223 = vcmask 654912
  %v224 = vsel %vm223, %v222, %v217
  %v225 = vadd.s32 %v157, 4294967216
  %v226 = vlaneseq
  %v227 = vshrl.u32 %v226, 7
  %v228 = vsub.s32 %v225, %v227
  %v229 = vrot.slane %v134, %v228
  %vm230 = vcmask 720512
  %v231 = vsel %vm230, %v229, %v224
  %v232 = vadd.s32 %v157, 4294967208
  %v233 = vlaneseq
  %v234 = vshrl.u32 %v233, 7
  %v235 = vsub.s32 %v232, %v234
  %v236 = vrot.slane %v135, %v235
  %vm237 = vcmask 786112
  %v238 = vsel %vm237, %v236, %v231
  %v239 = vadd.s32 %v157, 4294967200
  %v240 = vlaneseq
  %v241 = vshrl.u32 %v240, 7
  %v242 = vsub.s32 %v239, %v241
  %v243 = vrot.slane %v136, %v242
  %vm244 = vcmask 851712
  %v245 = vsel %vm244, %v243, %v238
  %v246 = vadd.s32 %v157, 4294967192
  %v247 = vlaneseq
  %v248 = vshrl.u32 %v247, 7
  %v249 = vsub.s32 %v246, %v248
  %v250 = vrot.slane %v137, %v249
  %vm251 = vcmask 917312
  %v252 = vsel %vm251, %v250, %v245
  %v253 = vadd.s32 %v157, 4294967184
  %v254 = vlaneseq
  %v255 = vshrl.u32 %v254, 7
  %v256 = vsub.s32 %v253, %v255
  %v257 = vrot.slane %v138, %v256
  %vm258 = vcmask 982912
  %v259 = vsel %vm258, %v257, %v252
  %v260 = vadd.s32 %v157, 4294967176
  %v261 = vlaneseq
  %v262 = vshrl.u32 %v261, 7
  %v263 = vsub.s32 %v260, %v262
  %v264 = vrot.slane %v139, %v263
  %vm265 = vcmask 1048512
  %v266 = vsel %vm265, %v264, %v259
  %268 = vst [vmem:[%s2] sm:$0x1] %v266
  // Predicated region
  $region10: #{vector_dist.1} parent=0 // pred_check
    _
  $region11: #{vector_dist.1} parent=0 // pred_check_branch
    %270 = sbr.rel (0) target = $region13
  $region12: #{vector_dist.1} parent=0 // pred_region
    _
  $region13: #{vector_dist.1} parent=0 // pred_fallthru
    _
  // Predicated region
  $region14: #{vector_dist.1} parent=0 // pred_check
    _
  $region15: #{vector_dist.1} parent=0 // pred_check_branch
    %272 = sbr.rel (0) target = $region17
  $region16: #{vector_dist.1} parent=0 // pred_region
    _
  $region17: #{vector_dist.1} parent=0 // pred_fallthru
    _

</llo_original>
